<compile_context>
chip_gen: v5e
topology: v5e:2x2
jax: 0.10.0
libtpu: 0.0.40
codegen_flags: <defaults>
</compile_context>

<pallas_src>
import functools
from typing import NamedTuple, Optional

import jax
import jax.numpy as jnp
from jax.experimental import pallas as pl
from jax.experimental.pallas import tpu as pltpu


# ----------------------------- small helpers --------------------------------

def _round_up(x, n):
    return (x + n - 1) // n * n


def _cdiv(a, b):
    return (a + b - 1) // b


def _tpu_generation():
    try:
        kind = jax.devices()[0].device_kind.lower()
    except Exception:
        return "unknown"
    if "v7" in kind:
        return "v7x"
    if "v6" in kind:
        return "v6e"
    if "v5" in kind and ("lite" in kind or "v5e" in kind):
        return "v5e"
    return "unknown"


def _default_tiles(gen):
    """(tm, th) defaults chosen so the weight stream hides under the MXU."""
    if gen == "v7x":
        return 512, 256
    if gen == "v6e":
        return 1024, 512
    if gen == "v5e":
        return 512, 512
    return 512, 512


def _vmem_budget_bytes(gen):
    """Usable VMEM budget for this kernel (leaves compiler-scratch headroom)."""
    cap = None
    try:
        cap = int(pltpu.get_tpu_info().vmem_capacity_bytes)
    except Exception:
        cap = None
    if not cap or cap <= 0:
        cap = (64 << 20) if gen == "v7x" else (128 << 20)
    if gen == "v7x":                       # 64 MiB per TensorCore
        cap = min(cap, 64 << 20)
    return int(0.80 * cap)


# ----------------------------- weight packing -------------------------------

class PackedFFN(NamedTuple):
    """Pre-padded, pre-interleaved FFN weights (pack once, reuse per step)."""
    w13: jax.Array      # (n_h, dim_p, 2*th)  : per hidden tile [w1 tile | w3 tile]
    w2: jax.Array       # (n_h, th, dim_p)
    dim: int
    hidden: int
    dim_p: int
    th: int


def pack_ffn_weights(w1_t, w3_t, w2_t, *, th: Optional[int] = None) -> PackedFFN:
    """w1_t/w3_t: [dim, hidden]; w2_t: [hidden, dim]. Zero padding is exact."""
    dim, hidden = w1_t.shape
    assert w3_t.shape == (dim, hidden) and w2_t.shape == (hidden, dim)

    if th is None:
        th = _default_tiles(_tpu_generation())[1]
    th = _round_up(min(th, _round_up(hidden, 128)), 128)
    dim_p = _round_up(dim, 128)
    hidden_p = _round_up(hidden, th)
    n_h = hidden_p // th

    def pad(w, r, c):
        if w.shape == (r, c):
            return w
        return jnp.zeros((r, c), w.dtype).at[: w.shape[0], : w.shape[1]].set(w)

    w1_p = pad(w1_t, dim_p, hidden_p)
    w3_p = pad(w3_t, dim_p, hidden_p)
    w2_p = pad(w2_t, hidden_p, dim_p)

    # (n_h, dim_p, 2*th): tile h holds [w1[:, h*th:(h+1)*th] | w3[:, h*th:(h+1)*th]]
    w13 = jnp.concatenate(
        [w1_p.reshape(dim_p, n_h, th).transpose(1, 0, 2),
         w3_p.reshape(dim_p, n_h, th).transpose(1, 0, 2)],
        axis=2,
    )
    w2r = w2_p.reshape(n_h, th, dim_p)
    return PackedFFN(w13=w13, w2=w2r, dim=dim, hidden=hidden, dim_p=dim_p, th=th)


# --------------------------------- kernel -----------------------------------

def _ffn_kernel(x_ref, w13_ref, w2_ref, o_ref, acc_ref, *, th, resident):
    # x_ref:   (tm, dim_p)
    # w13_ref: resident -> (n_h, dim_p, 2*th), full array, DMA'd once
    #          streaming -> (dim_p, 2*th) hidden panel (leading dim squeezed)
    # w2_ref:  resident -> (n_h, th, dim_p) ; streaming -> (th, dim_p)
    # o_ref:   (tm, dim_p)
    # acc_ref: (tm, dim_p) f32 scratch, resident across the hidden grid axis
    h = pl.program_id(1)

    @pl.when(h == 0)
    def _():
        acc_ref[...] = jnp.zeros_like(acc_ref)

    if resident:
        w13 = w13_ref[h]          # slice the hidden panel out of VMEM
        w2 = w2_ref[h]
    else:
        w13 = w13_ref[...]
        w2 = w2_ref[...]

    # Single fused up-projection on the MXU (native dtype in, f32 accumulate).
    x13 = jnp.dot(x_ref[...], w13, preferred_element_type=jnp.float32)
    x1 = x13[:, :th]              # th multiple of 128 -> free lane slice
    x3 = x13[:, th:]
    g = (x1 * jax.nn.sigmoid(x1)) * x3            # SiLU gate in f32 (EUP)

    # Down-projection for this hidden tile, accumulated in f32.
    acc_ref[...] += jnp.dot(g.astype(w2.dtype), w2,
                            preferred_element_type=jnp.float32)

    @pl.when(h == pl.num_programs(1) - 1)
    def _():
        o_ref[...] = acc_ref[...].astype(o_ref.dtype)


# --------------------------------- wrapper ----------------------------------

def feed_forward(x, w1_t=None, w3_t=None, w2_t=None, *, packed: Optional[PackedFFN] = None,
                 tm: Optional[int] = None, th: Optional[int] = None,
                 weights_resident: Optional[bool] = None, vmem_limit_bytes=None):
    """x: [..., dim]. Either pass raw w1_t/w3_t/w2_t or a pre-packed PackedFFN
    (preferred in a training/serving loop: packing then happens once)."""
    if packed is None:
        packed = pack_ffn_weights(w1_t, w3_t, w2_t, th=th)

    dim, hidden, dim_p, th = packed.dim, packed.hidden, packed.dim_p, packed.th
    n_h = packed.w13.shape[0]
    hidden_p = n_h * th

    orig_shape = x.shape
    assert orig_shape[-1] == dim, "last dim of x must equal weight dim"
    xm = x.reshape(-1, dim)
    m = xm.shape[0]
    dtype = x.dtype
    itemsize = jnp.dtype(dtype).itemsize
    w_itemsize = jnp.dtype(packed.w13.dtype).itemsize
    sub = 16 if dtype == jnp.bfloat16 else 8      # sublane packing granularity

    gen = _tpu_generation()
    vmem_budget = _vmem_budget_bytes(gen)

    # ---- M tile selection (generation-aware, VMEM-fitted) ----
    user_tm = tm is not None
    if tm is None:
        tm = _default_tiles(gen)[0]
    tm = _round_up(min(tm, _round_up(m, sub)), sub)
    # v7x has 2 TensorCores: make sure the "parallel" M axis has >=2 tiles.
    if gen == "v7x" and not user_tm and m >= 2 * sub and _cdiv(m, tm) < 2:
        tm = _round_up(_cdiv(m, 2), sub)

    w_bytes = (packed.w13.size + packed.w2.size) * w_itemsize

    def stream_need(tm_):
        return (2 * tm_ * dim_p * itemsize                       # x (double-buffered)
                + 2 * tm_ * dim_p * itemsize                     # out
                + 2 * (dim_p * 2 * th + th * dim_p) * w_itemsize  # weight panels
                + tm_ * dim_p * 4                                # f32 accumulator
                + 3 * tm_ * 2 * th * 4)                          # f32 intermediates headroom

    def resident_need(tm_):
        return (2 * tm_ * dim_p * itemsize
                + 2 * tm_ * dim_p * itemsize
                + 2 * w_bytes                                    # conservative (dbuf)
                + tm_ * dim_p * 4
                + 3 * tm_ * 2 * th * 4)

    if weights_resident is None:
        weights_resident = resident_need(tm) <= int(0.7 * vmem_budget)
    if weights_resident and resident_need(sub) > vmem_budget:
        weights_resident = False                                 # forced but impossible

    need_fn = resident_need if weights_resident else stream_need
    while need_fn(tm) > vmem_budget and tm > sub:
        tm = max(sub, _round_up(tm // 2, sub))

    m_p = _round_up(m, tm)
    n_m = m_p // tm

    # ---- x padding (skipped when already aligned; zero padding is exact) ----
    if xm.shape == (m_p, dim_p):
        xm_p = xm
    else:
        xm_p = jnp.zeros((m_p, dim_p), dtype).at[:m, :dim].set(xm)

    # ---- scheduler hints ----
    w_stream_factor = 1 if weights_resident else n_m
    cost = pl.CostEstimate(
        flops=6 * m_p * dim_p * hidden_p,
        transcendentals=m_p * hidden_p,
        bytes_accessed=int(m_p * dim_p * itemsize                  # x
                           + w_stream_factor * w_bytes             # weights (re-)streamed
                           + m_p * dim_p * itemsize),              # out
    )
    if vmem_limit_bytes is None:
        vmem_limit_bytes = int(min(vmem_budget,
                                   max(int(1.25 * need_fn(tm)), 32 << 20)))

    # ---- block specs ----
    if weights_resident:
        # Constant index_map: full packed weights DMA'd once, kernel slices panels.
        w13_spec = pl.BlockSpec((n_h, dim_p, 2 * th), lambda i, h: (0, 0, 0))
        w2_spec = pl.BlockSpec((n_h, th, dim_p), lambda i, h: (0, 0, 0))
    else:
        # Streamed hidden panels (leading tile axis squeezed out of the kernel ref).
        w13_spec = pl.BlockSpec((None, dim_p, 2 * th), lambda i, h: (h, 0, 0))
        w2_spec = pl.BlockSpec((None, th, dim_p), lambda i, h: (h, 0, 0))

    out = pl.pallas_call(
        functools.partial(_ffn_kernel, th=th, resident=weights_resident),
        out_shape=jax.ShapeDtypeStruct((m_p, dim_p), dtype),
        grid_spec=pltpu.PrefetchScalarGridSpec(
            num_scalar_prefetch=0,
            grid=(n_m, n_h),
            in_specs=[
                pl.BlockSpec((tm, dim_p), lambda i, h: (i, 0)),   # x rows (resident over h)
                w13_spec,                                          # fused w1|w3
                w2_spec,                                           # w2
            ],
            out_specs=pl.BlockSpec((tm, dim_p), lambda i, h: (i, 0)),
            scratch_shapes=[pltpu.VMEM((tm, dim_p), jnp.float32)],
        ),
        compiler_params=pltpu.CompilerParams(
            dimension_semantics=("parallel", "arbitrary"),
            vmem_limit_bytes=vmem_limit_bytes,
        ),
        cost_estimate=cost,
    )(xm_p, packed.w13, packed.w2)

    return out[:m, :dim].reshape(orig_shape)


# ------------------------ parameter init / reference ------------------------

def make_params(key, dim, hidden_dim_arg, multiple_of, ffn_dim_multiplier=None,
                dtype=jnp.float32):
    """Replicates FeedForward.__init__ hidden-dim math and reset_parameters init."""
    hidden_dim = int(2 * hidden_dim_arg / 3)
    if ffn_dim_multiplier is not None:
        hidden_dim = int(ffn_dim_multiplier * hidden_dim)
    hidden_dim = multiple_of * ((hidden_dim + multiple_of - 1) // multiple_of)

    in_std = dim ** (-0.5)
    out_std = hidden_dim ** (-0.5)
    k1, k2, k3 = jax.random.split(key, 3)
    # trunc_normal(mean=0, std=s, a=-3s, b=3s)  ==  s * truncated_normal(-3, 3)
    w1_t = (in_std * jax.random.truncated_normal(k1, -3.0, 3.0, (dim, hidden_dim))).astype(dtype)
    w3_t = (in_std * jax.random.truncated_normal(k3, -3.0, 3.0, (dim, hidden_dim))).astype(dtype)
    w2_t = (out_std * jax.random.truncated_normal(k2, -3.0, 3.0, (hidden_dim, dim))).astype(dtype)
    return w1_t, w3_t, w2_t, hidden_dim


def _reference(x, w1_t, w3_t, w2_t):
    xf = x.astype(jnp.float32)
    x1 = xf @ w1_t.astype(jnp.float32)
    x3 = xf @ w3_t.astype(jnp.float32)
    return (jax.nn.silu(x1) * x3) @ w2_t.astype(jnp.float32)


if __name__ == "__main__":
    # Small config: dim=64, hidden_dim arg=384, multiple_of=128 -> hidden=256.
    dim = 64
    batch, seq = 2, 16

    key = jax.random.PRNGKey(0)
    kx, kw = jax.random.split(key)
    w1_t, w3_t, w2_t, hidden_dim = make_params(
        kw, dim=dim, hidden_dim_arg=384, multiple_of=128, ffn_dim_multiplier=None)

    x = jax.random.normal(kx, (batch, seq, dim), dtype=jnp.float32)
    ref = _reference(x.reshape(-1, dim), w1_t, w3_t, w2_t).reshape(x.shape)

    # 1) default path: generation-aware tiles, auto weight residency
    out = jax.block_until_ready(feed_forward(x, w1_t, w3_t, w2_t))
    assert out.shape == x.shape
    assert jnp.allclose(out, ref, atol=1e-4, rtol=1e-4), "f32 (default) mismatch"

    # 2) pre-packed weights (pack once, reuse) + small tiles -> multi-tile grid,
    #    VMEM-resident fast path (kernel slices hidden panels in VMEM)
    packed = pack_ffn_weights(w1_t, w3_t, w2_t, th=128)
    out2 = jax.block_until_ready(feed_forward(x, packed=packed, tm=16))
    assert jnp.allclose(out2, ref, atol=1e-4, rtol=1e-4), "f32 (resident, tiled) mismatch"

    # 3) same packed weights, forced streaming-panel path (f32 accumulator over h)
    out3 = jax.block_until_ready(
        feed_forward(x, packed=packed, tm=16, weights_resident=False))
    assert jnp.allclose(out3, ref, atol=1e-4, rtol=1e-4), "f32 (streaming, tiled) mismatch"

    # 4) bf16 end-to-end: native bf16 into the MXU, f32 accumulation
    out_bf = jax.block_until_ready(
        feed_forward(x.astype(jnp.bfloat16), w1_t.astype(jnp.bfloat16),
                     w3_t.astype(jnp.bfloat16), w2_t.astype(jnp.bfloat16)))
    assert jnp.allclose(out_bf.astype(jnp.float32), ref, atol=0.1, rtol=0.1), \
        "bf16 mismatch vs f32 reference"

    print("KERNEL_OK")
</pallas_src>

<mosaic_0001>
module attributes {stable_mosaic.version = 11 : i64} {
  func.func @_ffn_kernel(%arg0: i32, %arg1: i32, %arg2: memref<32x128xf32, #tpu.memory_space<vmem>>, %arg3: memref<1x128x512xf32, #tpu.memory_space<vmem>>, %arg4: memref<1x256x128xf32, #tpu.memory_space<vmem>>, %arg5: memref<32x128xf32, #tpu.memory_space<vmem>>, %arg6: memref<32x128xf32, #tpu.memory_space<vmem>>) attributes {dimension_semantics = [#tpu.dimension_semantics<parallel>, #tpu.dimension_semantics<arbitrary>], iteration_bounds = array<i64: 1, 1>, scalar_prefetch = 0 : i64, scratch_operands = 1 : i64, tpu.core_type = #tpu.core_type<tc>, window_params = [{transform_indices = @transform_0, window_bounds = array<i64: 32, 128>}, {pipeline_mode = #tpu.pipeline_mode<synchronous>, transform_indices = @transform_1, window_bounds = array<i64: 1, 128, 512>}, {pipeline_mode = #tpu.pipeline_mode<synchronous>, transform_indices = @transform_2, window_bounds = array<i64: 1, 256, 128>}, {transform_indices = @transform_3, window_bounds = array<i64: 32, 128>}]} {
    %c0_i32 = arith.constant 0 : i32
    %0 = arith.cmpi eq, %arg1, %c0_i32 : i32
    %1 = arith.extui %0 : i1 to i32
    %c0_i32_0 = arith.constant 0 : i32
    %2 = arith.cmpi ne, %1, %c0_i32_0 : i32
    scf.if %2 {
      %cst_14 = arith.constant 0.000000e+00 : f32
      %27 = vector.broadcast %cst_14 : f32 to vector<32x128xf32>
      %c0_15 = arith.constant 0 : index
      %c0_16 = arith.constant 0 : index
      %28 = vector.load %arg6[%c0_15, %c0_16] : memref<32x128xf32, #tpu.memory_space<vmem>>, vector<32x128xf32>
      tpu.vector_store %arg6[%c0_15, %c0_16], %27 {strides = array<i32>} : memref<32x128xf32, #tpu.memory_space<vmem>>, vector<32x128xf32>,
    } else {
    }
    %3 = arith.index_cast %arg1 : i32 to index
    %c0 = arith.constant 0 : index
    %c0_1 = arith.constant 0 : index
    %4 = vector.load %arg3[%3, %c0, %c0_1] : memref<1x128x512xf32, #tpu.memory_space<vmem>>, vector<1x128x512xf32>
    %5 = vector.shape_cast %4 : vector<1x128x512xf32> to vector<128x512xf32>
    %6 = arith.index_cast %arg1 : i32 to index
    %c0_2 = arith.constant 0 : index
    %c0_3 = arith.constant 0 : index
    %7 = vector.load %arg4[%6, %c0_2, %c0_3] : memref<1x256x128xf32, #tpu.memory_space<vmem>>, vector<1x256x128xf32>
    %8 = vector.shape_cast %7 : vector<1x256x128xf32> to vector<256x128xf32>
    %c0_4 = arith.constant 0 : index
    %c0_5 = arith.constant 0 : index
    %9 = vector.load %arg2[%c0_4, %c0_5] : memref<32x128xf32, #tpu.memory_space<vmem>>, vector<32x128xf32>
    %cst = arith.constant dense<0.000000e+00> : vector<32x512xf32>
    %10 = tpu.matmul %9, %5, %cst {dimension_numbers = #tpu.dot_dimension_numbers<[1], [0], [0], [1], [0, 0, 1, 1], [], []>} : vector<32x128xf32>, vector<128x512xf32>, vector<32x512xf32> -> vector<32x512xf32>
    %11 = vector.extract_strided_slice %10 {offsets = [0, 0], sizes = [32, 256], strides = [1, 1]} : vector<32x512xf32> to vector<32x256xf32>
    %12 = vector.extract_strided_slice %10 {offsets = [0, 256], sizes = [32, 256], strides = [1, 1]} : vector<32x512xf32> to vector<32x256xf32>
    %13 = arith.negf %11 : vector<32x256xf32>
    %14 = math.exp %13 : vector<32x256xf32>
    %cst_6 = arith.constant 1.000000e+00 : f32
    %15 = vector.broadcast %cst_6 : f32 to vector<32x256xf32>
    %16 = arith.addf %15, %14 : vector<32x256xf32>
    %17 = arith.divf %15, %16 : vector<32x256xf32>
    %18 = arith.mulf %11, %17 : vector<32x256xf32>
    %19 = arith.mulf %18, %12 : vector<32x256xf32>
    %c0_7 = arith.constant 0 : index
    %c0_8 = arith.constant 0 : index
    %20 = vector.load %arg6[%c0_7, %c0_8] : memref<32x128xf32, #tpu.memory_space<vmem>>, vector<32x128xf32>
    %cst_9 = arith.constant dense<0.000000e+00> : vector<32x128xf32>
    %21 = tpu.matmul %19, %8, %cst_9 {dimension_numbers = #tpu.dot_dimension_numbers<[1], [0], [0], [1], [0, 0, 1, 1], [], []>} : vector<32x256xf32>, vector<256x128xf32>, vector<32x128xf32> -> vector<32x128xf32>
    %22 = arith.addf %20, %21 : vector<32x128xf32>
    %c0_10 = arith.constant 0 : index
    %c0_11 = arith.constant 0 : index
    %23 = vector.load %arg6[%c0_10, %c0_11] : memref<32x128xf32, #tpu.memory_space<vmem>>, vector<32x128xf32>
    tpu.vector_store %arg6[%c0_10, %c0_11], %22 {strides = array<i32>} : memref<32x128xf32, #tpu.memory_space<vmem>>, vector<32x128xf32>,
    %c0_i32_12 = arith.constant 0 : i32
    %24 = arith.cmpi eq, %arg1, %c0_i32_12 : i32
    %25 = arith.extui %24 : i1 to i32
    %c0_i32_13 = arith.constant 0 : i32
    %26 = arith.cmpi ne, %25, %c0_i32_13 : i32
    scf.if %26 {
      %c0_14 = arith.constant 0 : index
      %c0_15 = arith.constant 0 : index
      %27 = vector.load %arg6[%c0_14, %c0_15] : memref<32x128xf32, #tpu.memory_space<vmem>>, vector<32x128xf32>
      %c0_16 = arith.constant 0 : index
      %c0_17 = arith.constant 0 : index
      %28 = vector.load %arg5[%c0_16, %c0_17] : memref<32x128xf32, #tpu.memory_space<vmem>>, vector<32x128xf32>
      tpu.vector_store %arg5[%c0_16, %c0_17], %27 {strides = array<i32>} : memref<32x128xf32, #tpu.memory_space<vmem>>, vector<32x128xf32>,
    } else {
    }
    return
  }
  func.func @transform_0(%arg0: i32, %arg1: i32) -> (i32, i32) {
    %c0_i32 = arith.constant 0 : i32
    %c0_i32_0 = arith.constant 0 : i32
    return %arg0, %c0_i32 : i32, i32
  }
  func.func @transform_1(%arg0: i32, %arg1: i32) -> (i32, i32, i32) {
    %c0_i32 = arith.constant 0 : i32
    %c0_i32_0 = arith.constant 0 : i32
    %c0_i32_1 = arith.constant 0 : i32
    %c0_i32_2 = arith.constant 0 : i32
    return %c0_i32, %c0_i32_0, %c0_i32_1 : i32, i32, i32
  }
  func.func @transform_2(%arg0: i32, %arg1: i32) -> (i32, i32, i32) {
    %c0_i32 = arith.constant 0 : i32
    %c0_i32_0 = arith.constant 0 : i32
    %c0_i32_1 = arith.constant 0 : i32
    %c0_i32_2 = arith.constant 0 : i32
    return %c0_i32, %c0_i32_0, %c0_i32_1 : i32, i32, i32
  }
  func.func @transform_3(%arg0: i32, %arg1: i32) -> (i32, i32) {
    %c0_i32 = arith.constant 0 : i32
    %c0_i32_0 = arith.constant 0 : i32
    return %arg0, %c0_i32 : i32, i32
  }
}

</mosaic_0001>

<llo_original>
// kernel: tpu_custom_call.1
$region0: #{tpu_custom_call.1}
  #allocation0 [shape = 'u32[]', space=smem, size = 0x4, offset = 0x4, fixed_abs, tag = 'smem constant byte address 0x4 - core index']
  #allocation1 [shape = 'u32[72,128]{1,0:T(1,128)}', space=vmem, size = 0x9000, scoped, tag = 'internal scratch']
  #allocation2 [shape = 'f32[32,128]{1,0:T(8,128)}', space=vmem, size = 0x4000, scoped, tag = 'scratch operand']
  %s0 = inlined_call_operand.hbm [shape: f32[32,128], index: 0, kind: input, shape index: {}]
  %s1 = inlined_call_operand.hbm [shape: f32[1,128,512], index: 1, kind: input, shape index: {}]
  %s2 = inlined_call_operand.hbm [shape: f32[1,256,128], index: 2, kind: input, shape index: {}]
  %s3 = inlined_call_operand.hbm [shape: f32[32,128], index: 3, kind: output, shape index: {}]
  %s4 = sld [smem:[#allocation0]]
  $region42: #{tpu_custom_call.1} parent=0
    _
  %s6 = ssub.s32 1, %s4
  %s7 = scalar_select 0, %s6, %s4
  $region1: #{tpu_custom_call.1} parent=0
    #allocation3 [shape = 'u8[16384]{0}', space=vmem, size = 0x4000, scoped, tag = 'input window, operand 0, single buffered']
    #allocation4 [shape = 's32[1]{0}', space=sflag, size = 0x4, scoped, tag = 'scoped memory for tpu_custom_call.1']
    #allocation5 [shape = 's32[1]{0}', space=sflag, size = 0x4, scoped, tag = 'scoped memory for tpu_custom_call.1']
    #allocation6 [shape = 'u8[262144]{0}', space=vmem, size = 0x40000, scoped, tag = 'input window, operand 1, single buffered']
    #allocation7 [shape = 's32[1]{0}', space=sflag, size = 0x4, scoped, tag = 'scoped memory for tpu_custom_call.1']
    #allocation8 [shape = 'u8[131072]{0}', space=vmem, size = 0x20000, scoped, tag = 'input window, operand 2, single buffered']
    #allocation9 [shape = 'u8[16384]{0}', space=vmem, size = 0x4000, scoped, tag = 'output window, operand 0, single buffered']
    %8 = vsyncpa [#allocation4], 0
    %9 = vsyncpa [#allocation7], 0
    %10 = vsyncpa [#allocation5], 0
    // Predicated region
    $region2: #{tpu_custom_call.1} parent=1 // pred_check
      _
    $region3: #{tpu_custom_call.1} parent=1 // pred_check_branch
      %12 = sbr.rel (0) target = $region5
    $region4: #{tpu_custom_call.1} parent=1 // pred_region
      %14 = vsyncadd [#allocation4], 0
      %s15 = sshll.u32 %s0, 4
      %s16 = int_to_ptr.hbm [resolvable:$true] %s15
      %s17 = sshll.u32 [#allocation3], 4
      %s18 = int_to_ptr.vmem [resolvable:$true] %s17
      %23 = dma.hbm_to_vmem [thread:$0]  %s16, 512, %s18, [#allocation4], 128, 128, 8
    $region5: #{tpu_custom_call.1} parent=1 // pred_fallthru
      _
    // Predicated region
    $region6: #{tpu_custom_call.1} parent=1 // pred_check
      _
    $region7: #{tpu_custom_call.1} parent=1 // pred_check_branch
      %25 = sbr.rel (0) target = $region9
    $region8: #{tpu_custom_call.1} parent=1 // pred_region
      %27 = vsyncadd [#allocation7], 0
      %s28 = sshll.u32 %s1, 4
      %s29 = int_to_ptr.hbm [resolvable:$true] %s28
      %s30 = sshll.u32 [#allocation6], 4
      %s31 = int_to_ptr.vmem [resolvable:$true] %s30
      %36 = dma.hbm_to_vmem [thread:$0]  %s29, 8192, %s31, [#allocation7], 512, 512, 32
    $region9: #{tpu_custom_call.1} parent=1 // pred_fallthru
      _
    // Predicated region
    $region10: #{tpu_custom_call.1} parent=1 // pred_check
      _
    $region11: #{tpu_custom_call.1} parent=1 // pred_check_branch
      %38 = sbr.rel (0) target = $region13
    $region12: #{tpu_custom_call.1} parent=1 // pred_region
      %40 = vsyncadd [#allocation7], 0
      %s41 = sshll.u32 %s2, 4
      %s42 = int_to_ptr.hbm [resolvable:$true] %s41
      %s43 = sshll.u32 [#allocation8], 4
      %s44 = int_to_ptr.vmem [resolvable:$true] %s43
      %49 = dma.hbm_to_vmem [thread:$0]  %s42, 4096, %s44, [#allocation7], 128, 128, 8
    $region13: #{tpu_custom_call.1} parent=1 // pred_fallthru
      _
    // Predicated region
    $region14: #{tpu_custom_call.1} parent=1 // pred_check
      _
    $region15: #{tpu_custom_call.1} parent=1 // pred_check_branch
      %51 = sbr.rel (0) target = $region17
    $region16: #{tpu_custom_call.1} parent=1 // pred_region
      %53 = dma.done [#allocation4], 512
    $region17: #{tpu_custom_call.1} parent=1 // pred_fallthru
      _
    // Predicated region
    $region18: #{tpu_custom_call.1} parent=1 // pred_check
      _
    $region19: #{tpu_custom_call.1} parent=1 // pred_check_branch
      %55 = sbr.rel (0) target = $region21
    $region20: #{tpu_custom_call.1} parent=1 // pred_region
      %57 = dma.done [#allocation7], 8192
    $region21: #{tpu_custom_call.1} parent=1 // pred_fallthru
      _
    // Predicated region
    $region22: #{tpu_custom_call.1} parent=1 // pred_check
      _
    $region23: #{tpu_custom_call.1} parent=1 // pred_check_branch
      %59 = sbr.rel (0) target = $region25
    $region24: #{tpu_custom_call.1} parent=1 // pred_region
      %61 = dma.done [#allocation7], 4096
    $region25: #{tpu_custom_call.1} parent=1 // pred_fallthru
      _
    %p62 = scmp.eq.s32.totalorder 0, 0
    // Predicated region
    $region26: #{tpu_custom_call.1} parent=1 // pred_check
      %p63 = pneg %p62
    $region27: #{tpu_custom_call.1} parent=1 // pred_check_branch
      %65 = sbr.rel (%p63) target = $region29
    $region28: #{tpu_custom_call.1} parent=1 // pred_region
      %66 = vst [vmem:[#allocation2] sm:$0xff] 0.0
      %67 = vst [vmem:[#allocation2 + $0x8] sm:$0xff] 0.0
      %68 = vst [vmem:[#allocation2 + $0x10] sm:$0xff] 0.0
      %69 = vst [vmem:[#allocation2 + $0x18] sm:$0xff] 0.0
    $region29: #{tpu_custom_call.1} parent=1 // pred_fallthru
      _
    %s70 = smul.u32 0, 64
    %s71 = smul.addr %s70, 8
    %s72 = scalar_lea.vmem [#allocation6], %s71
    %v73 = vld [vmem:[%s72] sm:$0xff]
    %v74 = vld [vmem:[%s72 + $0x8] sm:$0xff]
    %v75 = vld [vmem:[%s72 + $0x10] sm:$0xff]
    %v76 = vld [vmem:[%s72 + $0x18] sm:$0xff]
    %v77 = vld [vmem:[%s72 + $0x20] sm:$0xff]
    %v78 = vld [vmem:[%s72 + $0x28] sm:$0xff]
    %v79 = vld [vmem:[%s72 + $0x30] sm:$0xff]
    %v80 = vld [vmem:[%s72 + $0x38] sm:$0xff]
    %v81 = vld [vmem:[%s72 + $0x40] sm:$0xff]
    %v82 = vld [vmem:[%s72 + $0x48] sm:$0xff]
    %v83 = vld [vmem:[%s72 + $0x50] sm:$0xff]
    %v84 = vld [vmem:[%s72 + $0x58] sm:$0xff]
    %v85 = vld [vmem:[%s72 + $0x60] sm:$0xff]
    %v86 = vld [vmem:[%s72 + $0x68] sm:$0xff]
    %v87 = vld [vmem:[%s72 + $0x70] sm:$0xff]
    %v88 = vld [vmem:[%s72 + $0x78] sm:$0xff]
    %v89 = vld [vmem:[%s72 + $0x80] sm:$0xff]
    %v90 = vld [vmem:[%s72 + $0x88] sm:$0xff]
    %v91 = vld [vmem:[%s72 + $0x90] sm:$0xff]
    %v92 = vld [vmem:[%s72 + $0x98] sm:$0xff]
    %v93 = vld [vmem:[%s72 + $0xa0] sm:$0xff]
    %v94 = vld [vmem:[%s72 + $0xa8] sm:$0xff]
    %v95 = vld [vmem:[%s72 + $0xb0] sm:$0xff]
    %v96 = vld [vmem:[%s72 + $0xb8] sm:$0xff]
    %v97 = vld [vmem:[%s72 + $0xc0] sm:$0xff]
    %v98 = vld [vmem:[%s72 + $0xc8] sm:$0xff]
    %v99 = vld [vmem:[%s72 + $0xd0] sm:$0xff]
    %v100 = vld [vmem:[%s72 + $0xd8] sm:$0xff]
    %v101 = vld [vmem:[%s72 + $0xe0] sm:$0xff]
    %v102 = vld [vmem:[%s72 + $0xe8] sm:$0xff]
    %v103 = vld [vmem:[%s72 + $0xf0] sm:$0xff]
    %v104 = vld [vmem:[%s72 + $0xf8] sm:$0xff]
    %v105 = vld [vmem:[%s72 + $0x100] sm:$0xff]
    %v106 = vld [vmem:[%s72 + $0x108] sm:$0xff]
    %v107 = vld [vmem:[%s72 + $0x110] sm:$0xff]
    %v108 = vld [vmem:[%s72 + $0x118] sm:$0xff]
    %v109 = vld [vmem:[%s72 + $0x120] sm:$0xff]
    %v110 = vld [vmem:[%s72 + $0x128] sm:$0xff]
    %v111 = vld [vmem:[%s72 + $0x130] sm:$0xff]
    %v112 = vld [vmem:[%s72 + $0x138] sm:$0xff]
    %v113 = vld [vmem:[%s72 + $0x140] sm:$0xff]
    %v114 = vld [vmem:[%s72 + $0x148] sm:$0xff]
    %v115 = vld [vmem:[%s72 + $0x150] sm:$0xff]
    %v116 = vld [vmem:[%s72 + $0x158] sm:$0xff]
    %v117 = vld [vmem:[%s72 + $0x160] sm:$0xff]
    %v118 = vld [vmem:[%s72 + $0x168] sm:$0xff]
    %v119 = vld [vmem:[%s72 + $0x170] sm:$0xff]
    %v120 = vld [vmem:[%s72 + $0x178] sm:$0xff]
    %v121 = vld [vmem:[%s72 + $0x180] sm:$0xff]
    %v122 = vld [vmem:[%s72 + $0x188] sm:$0xff]
    %v123 = vld [vmem:[%s72 + $0x190] sm:$0xff]
    %v124 = vld [vmem:[%s72 + $0x198] sm:$0xff]
    %v125 = vld [vmem:[%s72 + $0x1a0] sm:$0xff]
    %v126 = vld [vmem:[%s72 + $0x1a8] sm:$0xff]
    %v127 = vld [vmem:[%s72 + $0x1b0] sm:$0xff]
    %v128 = vld [vmem:[%s72 + $0x1b8] sm:$0xff]
    %v129 = vld [vmem:[%s72 + $0x1c0] sm:$0xff]
    %v130 = vld [vmem:[%s72 + $0x1c8] sm:$0xff]
    %v131 = vld [vmem:[%s72 + $0x1d0] sm:$0xff]
    %v132 = vld [vmem:[%s72 + $0x1d8] sm:$0xff]
    %v133 = vld [vmem:[%s72 + $0x1e0] sm:$0xff]
    %v134 = vld [vmem:[%s72 + $0x1e8] sm:$0xff]
    %v135 = vld [vmem:[%s72 + $0x1f0] sm:$0xff]
    %v136 = vld [vmem:[%s72 + $0x1f8] sm:$0xff]
    %s137 = smul.u32 0, 256
    %s138 = scalar_lea.vmem [#allocation8], %s137
    %v139 = vld [vmem:[%s138] sm:$0xff]
    %v140 = vld [vmem:[%s138 + $0x8] sm:$0xff]
    %v141 = vld [vmem:[%s138 + $0x10] sm:$0xff]
    %v142 = vld [vmem:[%s138 + $0x18] sm:$0xff]
    %v143 = vld [vmem:[%s138 + $0x20] sm:$0xff]
    %v144 = vld [vmem:[%s138 + $0x28] sm:$0xff]
    %v145 = vld [vmem:[%s138 + $0x30] sm:$0xff]
    %v146 = vld [vmem:[%s138 + $0x38] sm:$0xff]
    %v147 = vld [vmem:[%s138 + $0x40] sm:$0xff]
    %v148 = vld [vmem:[%s138 + $0x48] sm:$0xff]
    %v149 = vld [vmem:[%s138 + $0x50] sm:$0xff]
    %v150 = vld [vmem:[%s138 + $0x58] sm:$0xff]
    %v151 = vld [vmem:[%s138 + $0x60] sm:$0xff]
    %v152 = vld [vmem:[%s138 + $0x68] sm:$0xff]
    %v153 = vld [vmem:[%s138 + $0x70] sm:$0xff]
    %v154 = vld [vmem:[%s138 + $0x78] sm:$0xff]
    %v155 = vld [vmem:[%s138 + $0x80] sm:$0xff]
    %v156 = vld [vmem:[%s138 + $0x88] sm:$0xff]
    %v157 = vld [vmem:[%s138 + $0x90] sm:$0xff]
    %v158 = vld [vmem:[%s138 + $0x98] sm:$0xff]
    %v159 = vld [vmem:[%s138 + $0xa0] sm:$0xff]
    %v160 = vld [vmem:[%s138 + $0xa8] sm:$0xff]
    %v161 = vld [vmem:[%s138 + $0xb0] sm:$0xff]
    %v162 = vld [vmem:[%s138 + $0xb8] sm:$0xff]
    %v163 = vld [vmem:[%s138 + $0xc0] sm:$0xff]
    %v164 = vld [vmem:[%s138 + $0xc8] sm:$0xff]
    %v165 = vld [vmem:[%s138 + $0xd0] sm:$0xff]
    %v166 = vld [vmem:[%s138 + $0xd8] sm:$0xff]
    %v167 = vld [vmem:[%s138 + $0xe0] sm:$0xff]
    %v168 = vld [vmem:[%s138 + $0xe8] sm:$0xff]
    %v169 = vld [vmem:[%s138 + $0xf0] sm:$0xff]
    %v170 = vld [vmem:[%s138 + $0xf8] sm:$0xff]
    %v171 = vld [vmem:[#allocation3] sm:$0xff]
    %v172 = vld [vmem:[#allocation3 + $0x8] sm:$0xff]
    %v173 = vld [vmem:[#allocation3 + $0x10] sm:$0xff]
    %v174 = vld [vmem:[#allocation3 + $0x18] sm:$0xff]
    %175 = vmatpush.msra.mxu0 %v133
    %176 = vmatpush.msra.mxu0 %v129
    %177 = vmatpush.msra.mxu0 %v125
    %178 = vmatpush.msra.mxu0 %v121
    %179 = vmatpush.msra.mxu0 %v117
    %180 = vmatpush.msra.mxu0 %v113
    %181 = vmatpush.msra.mxu0 %v109
    %182 = vmatpush.msra.mxu0 %v105
    %183 = vmatpush.msra.mxu0 %v101
    %184 = vmatpush.msra.mxu0 %v97
    %185 = vmatpush.msra.mxu0 %v93
    %186 = vmatpush.msra.mxu0 %v89
    %187 = vmatpush.msra.mxu0 %v85
    %188 = vmatpush.msra.mxu0 %v81
    %189 = vmatpush.msra.mxu0 %v77
    %190 = vmatpush.msra.mxu0 %v73
    %191 = vmatmul.f32.gmra.mxu0 %v171
    %v192 = vpop.f32.mrf.mxu0
    %v193 = vadd.f32 0.0, %v192
    %194 = vmatmul.f32.gmra.mxu0 %v172
    %v195 = vpop.f32.mrf.mxu0
    %v196 = vadd.f32 0.0, %v195
    %197 = vmatmul.f32.gmra.mxu0 %v173
    %v198 = vpop.f32.mrf.mxu0
    %v199 = vadd.f32 0.0, %v198
    %200 = vmatmul.f32.gmra.mxu0 %v174
    %v201 = vpop.f32.mrf.mxu0
    %v202 = vadd.f32 0.0, %v201
    %203 = vdwg.mxu0
    %204 = vmatpush.msra.mxu0 %v134
    %205 = vmatpush.msra.mxu0 %v130
    %206 = vmatpush.msra.mxu0 %v126
    %207 = vmatpush.msra.mxu0 %v122
    %208 = vmatpush.msra.mxu0 %v118
    %209 = vmatpush.msra.mxu0 %v114
    %210 = vmatpush.msra.mxu0 %v110
    %211 = vmatpush.msra.mxu0 %v106
    %212 = vmatpush.msra.mxu0 %v102
    %213 = vmatpush.msra.mxu0 %v98
    %214 = vmatpush.msra.mxu0 %v94
    %215 = vmatpush.msra.mxu0 %v90
    %216 = vmatpush.msra.mxu0 %v86
    %217 = vmatpush.msra.mxu0 %v82
    %218 = vmatpush.msra.mxu0 %v78
    %219 = vmatpush.msra.mxu0 %v74
    %220 = vmatmul.f32.gmra.mxu0 %v171
    %v221 = vpop.f32.mrf.mxu0
    %v222 = vadd.f32 0.0, %v221
    %223 = vmatmul.f32.gmra.mxu0 %v172
    %v224 = vpop.f32.mrf.mxu0
    %v225 = vadd.f32 0.0, %v224
    %226 = vmatmul.f32.gmra.mxu0 %v173
    %v227 = vpop.f32.mrf.mxu0
    %v228 = vadd.f32 0.0, %v227
    %229 = vmatmul.f32.gmra.mxu0 %v174
    %v230 = vpop.f32.mrf.mxu0
    %v231 = vadd.f32 0.0, %v230
    %232 = vdwg.mxu0
    %233 = vmatpush.msra.mxu0 %v135
    %234 = vmatpush.msra.mxu0 %v131
    %235 = vmatpush.msra.mxu0 %v127
    %236 = vmatpush.msra.mxu0 %v123
    %237 = vmatpush.msra.mxu0 %v119
    %238 = vmatpush.msra.mxu0 %v115
    %239 = vmatpush.msra.mxu0 %v111
    %240 = vmatpush.msra.mxu0 %v107
    %241 = vmatpush.msra.mxu0 %v103
    %242 = vmatpush.msra.mxu0 %v99
    %243 = vmatpush.msra.mxu0 %v95
    %244 = vmatpush.msra.mxu0 %v91
    %245 = vmatpush.msra.mxu0 %v87
    %246 = vmatpush.msra.mxu0 %v83
    %247 = vmatpush.msra.mxu0 %v79
    %248 = vmatpush.msra.mxu0 %v75
    %249 = vmatmul.f32.gmra.mxu0 %v171
    %v250 = vpop.f32.mrf.mxu0
    %v251 = vadd.f32 0.0, %v250
    %252 = vmatmul.f32.gmra.mxu0 %v172
    %v253 = vpop.f32.mrf.mxu0
    %v254 = vadd.f32 0.0, %v253
    %255 = vmatmul.f32.gmra.mxu0 %v173
    %v256 = vpop.f32.mrf.mxu0
    %v257 = vadd.f32 0.0, %v256
    %258 = vmatmul.f32.gmra.mxu0 %v174
    %v259 = vpop.f32.mrf.mxu0
    %v260 = vadd.f32 0.0, %v259
    %261 = vdwg.mxu0
    %262 = vmatpush.msra.mxu0 %v136
    %263 = vmatpush.msra.mxu0 %v132
    %264 = vmatpush.msra.mxu0 %v128
    %265 = vmatpush.msra.mxu0 %v124
    %266 = vmatpush.msra.mxu0 %v120
    %267 = vmatpush.msra.mxu0 %v116
    %268 = vmatpush.msra.mxu0 %v112
    %269 = vmatpush.msra.mxu0 %v108
    %270 = vmatpush.msra.mxu0 %v104
    %271 = vmatpush.msra.mxu0 %v100
    %272 = vmatpush.msra.mxu0 %v96
    %273 = vmatpush.msra.mxu0 %v92
    %274 = vmatpush.msra.mxu0 %v88
    %275 = vmatpush.msra.mxu0 %v84
    %276 = vmatpush.msra.mxu0 %v80
    %277 = vmatpush.msra.mxu0 %v76
    %278 = vmatmul.f32.gmra.mxu0 %v171
    %v279 = vpop.f32.mrf.mxu0
    %v280 = vadd.f32 0.0, %v279
    %281 = vmatmul.f32.gmra.mxu0 %v172
    %v282 = vpop.f32.mrf.mxu0
    %v283 = vadd.f32 0.0, %v282
    %284 = vmatmul.f32.gmra.mxu0 %v173
    %v285 = vpop.f32.mrf.mxu0
    %v286 = vadd.f32 0.0, %v285
    %287 = vmatmul.f32.gmra.mxu0 %v174
    %v288 = vpop.f32.mrf.mxu0
    %v289 = vadd.f32 0.0, %v288
    %290 = vdwg.mxu0
    %v291 = vxor.u32 %v193, 2147483648
    %v292 = vxor.u32 %v222, 2147483648
    %v293 = vxor.u32 %v196, 2147483648
    %v294 = vxor.u32 %v225, 2147483648
    %v295 = vxor.u32 %v199, 2147483648
    %v296 = vxor.u32 %v228, 2147483648
    %v297 = vxor.u32 %v202, 2147483648
    %v298 = vxor.u32 %v231, 2147483648
    %v299 = vmul.f32 %v291, 1.442695
    %v300 = vpow.pop %v299
    %v301 = vmul.f32 %v292, 1.442695
    %v302 = vpow.pop %v301
    %v303 = vmul.f32 %v293, 1.442695
    %v304 = vpow.pop %v303
    %v305 = vmul.f32 %v294, 1.442695
    %v306 = vpow.pop %v305
    %v307 = vmul.f32 %v295, 1.442695
    %v308 = vpow.pop %v307
    %v309 = vmul.f32 %v296, 1.442695
    %v310 = vpow.pop %v309
    %v311 = vmul.f32 %v297, 1.442695
    %v312 = vpow.pop %v311
    %v313 = vmul.f32 %v298, 1.442695
    %v314 = vpow.pop %v313
    %v315 = vadd.f32 %v300, 1.0
    %v316 = vadd.f32 %v302, 1.0
    %v317 = vadd.f32 %v304, 1.0
    %v318 = vadd.f32 %v306, 1.0
    %v319 = vadd.f32 %v308, 1.0
    %v320 = vadd.f32 %v310, 1.0
    %v321 = vadd.f32 %v312, 1.0
    %v322 = vadd.f32 %v314, 1.0
    %v323 = vrcp.pop %v315
    %v324 = vmul.f32 %v315, %v323
    %v325 = vsub.f32 1.0, %v324
    %v326 = vmul.f32 %v323, %v325
    %v327 = vadd.f32 %v323, %v326
    %vm328 = vweird.f32 %v315
    %vm329 = vweird.f32 %v323
    %vm330 = vmor %vm328, %vm329
    %v331 = vsel %vm330, %v323, %v327
    %v332 = vand.u32 2147483647, %v315
    %vm333 = vcmp.eq.f32.partialorder %v332, 8.507059e+37
    %v334 = vand.u32 %v315, 2147483648
    %v335 = vor.u32 1.1754944e-38, %v334
    %v336 = vsel %vm333, %v335, %v331
    %v337 = vmul.f32 1.0, %v336
    %v338 = vrcp.pop %v316
    %v339 = vmul.f32 %v316, %v338
    %v340 = vsub.f32 1.0, %v339
    %v341 = vmul.f32 %v338, %v340
    %v342 = vadd.f32 %v338, %v341
    %vm343 = vweird.f32 %v316
    %vm344 = vweird.f32 %v338
    %vm345 = vmor %vm343, %vm344
    %v346 = vsel %vm345, %v338, %v342
    %v347 = vand.u32 2147483647, %v316
    %vm348 = vcmp.eq.f32.partialorder %v347, 8.507059e+37
    %v349 = vand.u32 %v316, 2147483648
    %v350 = vor.u32 1.1754944e-38, %v349
    %v351 = vsel %vm348, %v350, %v346
    %v352 = vmul.f32 1.0, %v351
    %v353 = vrcp.pop %v317
    %v354 = vmul.f32 %v317, %v353
    %v355 = vsub.f32 1.0, %v354
    %v356 = vmul.f32 %v353, %v355
    %v357 = vadd.f32 %v353, %v356
    %vm358 = vweird.f32 %v317
    %vm359 = vweird.f32 %v353
    %vm360 = vmor %vm358, %vm359
    %v361 = vsel %vm360, %v353, %v357
    %v362 = vand.u32 2147483647, %v317
    %vm363 = vcmp.eq.f32.partialorder %v362, 8.507059e+37
    %v364 = vand.u32 %v317, 2147483648
    %v365 = vor.u32 1.1754944e-38, %v364
    %v366 = vsel %vm363, %v365, %v361
    %v367 = vmul.f32 1.0, %v366
    %v368 = vrcp.pop %v318
    %v369 = vmul.f32 %v318, %v368
    %v370 = vsub.f32 1.0, %v369
    %v371 = vmul.f32 %v368, %v370
    %v372 = vadd.f32 %v368, %v371
    %vm373 = vweird.f32 %v318
    %vm374 = vweird.f32 %v368
    %vm375 = vmor %vm373, %vm374
    %v376 = vsel %vm375, %v368, %v372
    %v377 = vand.u32 2147483647, %v318
    %vm378 = vcmp.eq.f32.partialorder %v377, 8.507059e+37
    %v379 = vand.u32 %v318, 2147483648
    %v380 = vor.u32 1.1754944e-38, %v379
    %v381 = vsel %vm378, %v380, %v376
    %v382 = vmul.f32 1.0, %v381
    %v383 = vrcp.pop %v319
    %v384 = vmul.f32 %v319, %v383
    %v385 = vsub.f32 1.0, %v384
    %v386 = vmul.f32 %v383, %v385
    %v387 = vadd.f32 %v383, %v386
    %vm388 = vweird.f32 %v319
    %vm389 = vweird.f32 %v383
    %vm390 = vmor %vm388, %vm389
    %v391 = vsel %vm390, %v383, %v387
    %v392 = vand.u32 2147483647, %v319
    %vm393 = vcmp.eq.f32.partialorder %v392, 8.507059e+37
    %v394 = vand.u32 %v319, 2147483648
    %v395 = vor.u32 1.1754944e-38, %v394
    %v396 = vsel %vm393, %v395, %v391
    %v397 = vmul.f32 1.0, %v396
    %v398 = vrcp.pop %v320
    %v399 = vmul.f32 %v320, %v398
    %v400 = vsub.f32 1.0, %v399
    %v401 = vmul.f32 %v398, %v400
    %v402 = vadd.f32 %v398, %v401
    %vm403 = vweird.f32 %v320
    %vm404 = vweird.f32 %v398
    %vm405 = vmor %vm403, %vm404
    %v406 = vsel %vm405, %v398, %v402
    %v407 = vand.u32 2147483647, %v320
    %vm408 = vcmp.eq.f32.partialorder %v407, 8.507059e+37
    %v409 = vand.u32 %v320, 2147483648
    %v410 = vor.u32 1.1754944e-38, %v409
    %v411 = vsel %vm408, %v410, %v406
    %v412 = vmul.f32 1.0, %v411
    %v413 = vrcp.pop %v321
    %v414 = vmul.f32 %v321, %v413
    %v415 = vsub.f32 1.0, %v414
    %v416 = vmul.f32 %v413, %v415
    %v417 = vadd.f32 %v413, %v416
    %vm418 = vweird.f32 %v321
    %vm419 = vweird.f32 %v413
    %vm420 = vmor %vm418, %vm419
    %v421 = vsel %vm420, %v413, %v417
    %v422 = vand.u32 2147483647, %v321
    %vm423 = vcmp.eq.f32.partialorder %v422, 8.507059e+37
    %v424 = vand.u32 %v321, 2147483648
    %v425 = vor.u32 1.1754944e-38, %v424
    %v426 = vsel %vm423, %v425, %v421
    %v427 = vmul.f32 1.0, %v426
    %v428 = vrcp.pop %v322
    %v429 = vmul.f32 %v322, %v428
    %v430 = vsub.f32 1.0, %v429
    %v431 = vmul.f32 %v428, %v430
    %v432 = vadd.f32 %v428, %v431
    %vm433 = vweird.f32 %v322
    %vm434 = vweird.f32 %v428
    %vm435 = vmor %vm433, %vm434
    %v436 = vsel %vm435, %v428, %v432
    %v437 = vand.u32 2147483647, %v322
    %vm438 = vcmp.eq.f32.partialorder %v437, 8.507059e+37
    %v439 = vand.u32 %v322, 2147483648
    %v440 = vor.u32 1.1754944e-38, %v439
    %v441 = vsel %vm438, %v440, %v436
    %v442 = vmul.f32 1.0, %v441
    %v443 = vmul.f32 %v193, %v337
    %v444 = vmul.f32 %v222, %v352
    %v445 = vmul.f32 %v196, %v367
    %v446 = vmul.f32 %v225, %v382
    %v447 = vmul.f32 %v199, %v397
    %v448 = vmul.f32 %v228, %v412
    %v449 = vmul.f32 %v202, %v427
    %v450 = vmul.f32 %v231, %v442
    %v451 = vmul.f32 %v443, %v251
    %v452 = vmul.f32 %v444, %v280
    %v453 = vmul.f32 %v445, %v254
    %v454 = vmul.f32 %v446, %v283
    %v455 = vmul.f32 %v447, %v257
    %v456 = vmul.f32 %v448, %v286
    %v457 = vmul.f32 %v449, %v260
    %v458 = vmul.f32 %v450, %v289
    %v459 = vld [vmem:[#allocation2] sm:$0xff]
    %v460 = vld [vmem:[#allocation2 + $0x8] sm:$0xff]
    %v461 = vld [vmem:[#allocation2 + $0x10] sm:$0xff]
    %v462 = vld [vmem:[#allocation2 + $0x18] sm:$0xff]
    %463 = vmatpush.msra.mxu0 %v154
    %464 = vmatpush.msra.mxu0 %v153
    %465 = vmatpush.msra.mxu0 %v152
    %466 = vmatpush.msra.mxu0 %v151
    %467 = vmatpush.msra.mxu0 %v150
    %468 = vmatpush.msra.mxu0 %v149
    %469 = vmatpush.msra.mxu0 %v148
    %470 = vmatpush.msra.mxu0 %v147
    %471 = vmatpush.msra.mxu0 %v146
    %472 = vmatpush.msra.mxu0 %v145
    %473 = vmatpush.msra.mxu0 %v144
    %474 = vmatpush.msra.mxu0 %v143
    %475 = vmatpush.msra.mxu0 %v142
    %476 = vmatpush.msra.mxu0 %v141
    %477 = vmatpush.msra.mxu0 %v140
    %478 = vmatpush.msra.mxu0 %v139
    %479 = vmatmul.f32.gmra.mxu0 %v451
    %v480 = vpop.f32.mrf.mxu0
    %v481 = vadd.f32 0.0, %v480
    %482 = vmatmul.f32.gmra.mxu0 %v453
    %v483 = vpop.f32.mrf.mxu0
    %v484 = vadd.f32 0.0, %v483
    %485 = vmatmul.f32.gmra.mxu0 %v455
    %v486 = vpop.f32.mrf.mxu0
    %v487 = vadd.f32 0.0, %v486
    %488 = vmatmul.f32.gmra.mxu0 %v457
    %v489 = vpop.f32.mrf.mxu0
    %v490 = vadd.f32 0.0, %v489
    %491 = vdwg.mxu0
    %492 = vmatpush.msra.mxu0 %v170
    %493 = vmatpush.msra.mxu0 %v169
    %494 = vmatpush.msra.mxu0 %v168
    %495 = vmatpush.msra.mxu0 %v167
    %496 = vmatpush.msra.mxu0 %v166
    %497 = vmatpush.msra.mxu0 %v165
    %498 = vmatpush.msra.mxu0 %v164
    %499 = vmatpush.msra.mxu0 %v163
    %500 = vmatpush.msra.mxu0 %v162
    %501 = vmatpush.msra.mxu0 %v161
    %502 = vmatpush.msra.mxu0 %v160
    %503 = vmatpush.msra.mxu0 %v159
    %504 = vmatpush.msra.mxu0 %v158
    %505 = vmatpush.msra.mxu0 %v157
    %506 = vmatpush.msra.mxu0 %v156
    %507 = vmatpush.msra.mxu0 %v155
    %508 = vmatmul.f32.gmra.mxu0 %v452
    %v509 = vpop.f32.mrf.mxu0
    %v510 = vadd.f32 %v481, %v509
    %511 = vmatmul.f32.gmra.mxu0 %v454
    %v512 = vpop.f32.mrf.mxu0
    %v513 = vadd.f32 %v484, %v512
    %514 = vmatmul.f32.gmra.mxu0 %v456
    %v515 = vpop.f32.mrf.mxu0
    %v516 = vadd.f32 %v487, %v515
    %517 = vmatmul.f32.gmra.mxu0 %v458
    %v518 = vpop.f32.mrf.mxu0
    %v519 = vadd.f32 %v490, %v518
    %520 = vdwg.mxu0
    %v521 = vadd.f32 %v459, %v510
    %v522 = vadd.f32 %v460, %v513
    %v523 = vadd.f32 %v461, %v516
    %v524 = vadd.f32 %v462, %v519
    %525 = vst [vmem:[#allocation2] sm:$0xff] %v521
    %526 = vst [vmem:[#allocation2 + $0x8] sm:$0xff] %v522
    %527 = vst [vmem:[#allocation2 + $0x10] sm:$0xff] %v523
    %528 = vst [vmem:[#allocation2 + $0x18] sm:$0xff] %v524
    // Predicated region
    $region30: #{tpu_custom_call.1} parent=1 // pred_check
      %p529 = pneg %p62
    $region31: #{tpu_custom_call.1} parent=1 // pred_check_branch
      %531 = sbr.rel (%p529) target = $region33
    $region32: #{tpu_custom_call.1} parent=1 // pred_region
      %v532 = vld [vmem:[#allocation2] sm:$0xff]
      %v533 = vld [vmem:[#allocation2 + $0x8] sm:$0xff]
      %v534 = vld [vmem:[#allocation2 + $0x10] sm:$0xff]
      %v535 = vld [vmem:[#allocation2 + $0x18] sm:$0xff]
      %536 = vst [vmem:[#allocation9] sm:$0xff] %v532
      %537 = vst [vmem:[#allocation9 + $0x8] sm:$0xff] %v533
      %538 = vst [vmem:[#allocation9 + $0x10] sm:$0xff] %v534
      %539 = vst [vmem:[#allocation9 + $0x18] sm:$0xff] %v535
    $region33: #{tpu_custom_call.1} parent=1 // pred_fallthru
      _
    // Predicated region
    $region34: #{tpu_custom_call.1} parent=1 // pred_check
      _
    $region35: #{tpu_custom_call.1} parent=1 // pred_check_branch
      %541 = sbr.rel (0) target = $region37
    $region36: #{tpu_custom_call.1} parent=1 // pred_region
      %543 = vsyncadd [#allocation5], 0
      %s544 = sshll.u32 [#allocation9], 4
      %s545 = int_to_ptr.vmem [resolvable:$true] %s544
      %s546 = sshll.u32 %s3, 4
      %s547 = int_to_ptr.hbm [resolvable:$true] %s546
      %552 = dma.vmem_to_hbm [thread:$0]  %s545, 512, %s547, [#allocation5], 128, 128, 8
    $region37: #{tpu_custom_call.1} parent=1 // pred_fallthru
      _
    // Predicated region
    $region38: #{tpu_custom_call.1} parent=1 // pred_check
      _
    $region39: #{tpu_custom_call.1} parent=1 // pred_check_branch
      %554 = sbr.rel (0) target = $region41
    $region40: #{tpu_custom_call.1} parent=1 // pred_region
      %556 = dma.done [#allocation5], 512
    $region41: #{tpu_custom_call.1} parent=1 // pred_fallthru
      _
    %557 = vsyncpa [#allocation4], 1
    %558 = vsyncpa [#allocation7], 1
    %559 = vsyncpa [#allocation5], 1

</llo_original>
